<compile_context>
chip_gen: v7x
topology: tpu7x:2x2x1
jax: 0.10.0
libtpu: 0.0.40
codegen_flags: <defaults>
</compile_context>

<pallas_src>
import functools

import jax
import jax.numpy as jnp
import numpy as np
from jax.experimental import pallas as pl
from jax.experimental.pallas import tpu as pltpu

_MIB = 1024 * 1024


def _cost_volume_kernel(x_ref, y_ref, o_ref, *, maxdisp, channels,
                        depth_tile, mask_w):
    # x_ref, y_ref: (C, TH, W) VMEM tiles.  Their block index ignores the depth
    # grid axis, so they stay VMEM-resident across the whole depth sweep.
    # o_ref: (2C, TD, TH, W) VMEM tile for the current (n, h_tile, d_block).
    d = pl.program_id(2)
    x = x_ref[...]
    y = y_ref[...]
    zero = jnp.zeros((), dtype=x.dtype)
    width = x.shape[-1]

    # Only columns w < maxdisp can ever be masked; mask_w is that bound rounded
    # up to a lane multiple (128), so selects touch a small lane-aligned
    # leading sub-block instead of the whole tile.
    w_idx = jax.lax.broadcasted_iota(jnp.int32, (1, 1, mask_w), 2)

    for t in range(depth_tile):                    # static unroll over depth slots
        i = maxdisp - 1 - (d * depth_tile + t)     # disparity shift (dynamic in d)
        # y_part[w] = y[w - i] for w >= i (XLU rotate; wrapped columns at w < i
        # are zeroed by the same mask).
        y_shift = pltpu.roll(y, shift=i, axis=2)
        valid = w_idx >= i
        o_ref[:channels, t, :, :mask_w] = jnp.where(
            valid, x[:, :, :mask_w], zero).astype(o_ref.dtype)
        o_ref[channels:, t, :, :mask_w] = jnp.where(
            valid, y_shift[:, :, :mask_w], zero).astype(o_ref.dtype)
        if mask_w < width:
            # Columns >= maxdisp are always valid -> store straight through.
            o_ref[:channels, t, :, mask_w:] = x[:, :, mask_w:].astype(o_ref.dtype)
            o_ref[channels:, t, :, mask_w:] = y_shift[:, :, mask_w:].astype(o_ref.dtype)


def _vmem_params():
    """Generation-aware (tiler budget, vmem_limit_bytes)."""
    try:
        cap = int(getattr(pltpu.get_tpu_info(), "vmem_capacity_bytes", 0) or 0)
    except Exception:
        cap = 0
    if cap >= 96 * _MIB:          # v5e / v6e: 128 MiB physical VMEM
        return 80 * _MIB, 96 * _MIB
    # v7x (64 MiB per TC) or unknown: stay conservative.
    return 36 * _MIB, 48 * _MIB


def _choose_tiles(C, H, W, maxdisp, in_bytes, out_bytes, budget_bytes,
                  min_out_block_bytes):
    """Pick (row tile TH, depth tile TD).

    Hard constraints: TH divides H and obeys the (8,128) block rule
    (TH % 8 == 0 or TH == H); TD divides maxdisp; estimated per-step VMEM
    (double-buffered in/out blocks + in-kernel temporaries) fits the budget.
    Preference: per-step output DMA >= min_out_block_bytes (hides the
    ~0.35 us grid-step overhead), dtype-native sublane alignment, fewest
    grid steps, then smallest footprint.
    """
    align_pref = max(8 * (4 // in_bytes), 8 * (4 // out_bytes), 8)

    ths = [t for t in range(1, H + 1)
           if H % t == 0 and (t % 8 == 0 or t == H)]
    tds = [t for t in range(1, maxdisp + 1) if maxdisp % t == 0]

    def vmem_bytes(th, td):
        ins = 2 * 2 * C * th * W * in_bytes            # x, y double-buffered
        outs = 2 * 2 * C * td * th * W * out_bytes     # output block double-buffered
        temps = 3 * C * th * W * in_bytes              # rolled y + masked selects
        return ins + outs + temps

    cands = [(th, td) for td in tds for th in ths]
    fitting = [c for c in cands if vmem_bytes(*c) <= budget_bytes]
    if not fitting:
        # Nothing fits the budget (huge C*W): smallest footprint; rely on the
        # vmem_limit_bytes headroom.
        return min(cands, key=lambda c: vmem_bytes(*c))

    def score(c):
        th, td = c
        out_blk = 2 * C * td * th * W * out_bytes
        steps = (H // th) * (maxdisp // td)
        return (out_blk >= min_out_block_bytes,
                th % align_pref == 0,
                -steps,
                -vmem_bytes(th, td))

    return max(fitting, key=score)


def get_cost_volume(x, y, maxdisp, *, out_dtype=None,
                    min_out_block_bytes=1 * _MIB):
    """x, y: (N, C, H, W) -> cost: (N, 2C, maxdisp, H, W).

    out_dtype defaults to the input dtype (exact PyTorch semantics); pass
    jnp.bfloat16 to halve HBM write traffic of this purely store-bound op.
    """
    assert x.shape == y.shape and x.dtype == y.dtype
    N, C, H, W = x.shape
    assert 1 <= maxdisp <= W, "maxdisp must be in [1, W]"
    out_dtype = x.dtype if out_dtype is None else jnp.dtype(out_dtype)

    in_bytes = jnp.dtype(x.dtype).itemsize
    out_bytes = jnp.dtype(out_dtype).itemsize

    # Lane-dense stores: pad W up to a multiple of 128, slice the result back.
    Wp = ((W + 127) // 128) * 128
    if Wp != W:
        pad = ((0, 0), (0, 0), (0, 0), (0, Wp - W))
        x = jnp.pad(x, pad)
        y = jnp.pad(y, pad)

    budget_bytes, vmem_limit_bytes = _vmem_params()
    th, td = _choose_tiles(C, H, Wp, maxdisp, in_bytes, out_bytes,
                           budget_bytes, min_out_block_bytes)

    # Static bound on the columns that ever need masking (lane-aligned).
    mask_w = min(Wp, ((maxdisp + 127) // 128) * 128)

    kernel = functools.partial(_cost_volume_kernel, maxdisp=maxdisp,
                               channels=C, depth_tile=td, mask_w=mask_w)

    bytes_accessed = (2 * N * C * H * Wp * in_bytes
                      + N * 2 * C * maxdisp * H * Wp * out_bytes)

    cost = pl.pallas_call(
        kernel,
        out_shape=jax.ShapeDtypeStruct((N, 2 * C, maxdisp, H, Wp), out_dtype),
        grid_spec=pltpu.PrefetchScalarGridSpec(
            num_scalar_prefetch=0,
            # Depth innermost: x/y block indices ignore d, so inputs are DMA'd
            # from HBM once per (n, h) tile and stay resident across the whole
            # depth sweep; only the maxdisp-times larger output streams out.
            grid=(N, H // th, maxdisp // td),
            in_specs=[
                pl.BlockSpec((pl.Squeezed(), C, th, Wp),
                             lambda n, h, d: (n, 0, h, 0)),
                pl.BlockSpec((pl.Squeezed(), C, th, Wp),
                             lambda n, h, d: (n, 0, h, 0)),
            ],
            out_specs=pl.BlockSpec(
                (pl.Squeezed(), 2 * C, td, th, Wp),
                lambda n, h, d: (n, 0, d, h, 0),
            ),
        ),
        compiler_params=pltpu.CompilerParams(
            # Megacore split on N / H-tiles; each core runs its own contiguous
            # depth sweep (input residency preserved per core).
            dimension_semantics=("parallel", "parallel", "arbitrary"),
            vmem_limit_bytes=vmem_limit_bytes,
        ),
        cost_estimate=pl.CostEstimate(flops=0, transcendentals=0,
                                      bytes_accessed=bytes_accessed),
    )(x, y)

    if Wp != W:
        cost = cost[..., :W]
    return cost


def _reference_cost_volume(x, y, maxdisp):
    """Pure numpy reference mirroring the PyTorch loop."""
    x = np.asarray(x)
    y = np.asarray(y)
    N, C, H, W = x.shape
    cost = np.zeros((N, 2 * C, maxdisp, H, W), dtype=x.dtype)
    for i in range(maxdisp):
        dd = maxdisp - 1 - i
        if i > 0:
            cost[:, :C, dd, :, i:] = x[:, :, :, i:]
            cost[:, C:, dd, :, i:] = y[:, :, :, :-i]
        else:
            cost[:, :C, dd, :, :] = x
            cost[:, C:, dd, :, :] = y
    return cost


if __name__ == "__main__":
    key = jax.random.PRNGKey(0)
    kx, ky = jax.random.split(key)

    # Small but lane-dense demo shapes (W = 128 -> unmasked vector stores).
    N, C, H, W = 2, 4, 16, 128
    maxdisp = 4

    x = jax.random.normal(kx, (N, C, H, W), dtype=jnp.float32)
    y = jax.random.normal(ky, (N, C, H, W), dtype=jnp.float32)

    cost = get_cost_volume(x, y, maxdisp)
    cost = jax.block_until_ready(cost)

    ref = _reference_cost_volume(x, y, maxdisp)
    np.testing.assert_allclose(np.asarray(cost), ref, rtol=0, atol=0)

    print("KERNEL_OK")
</pallas_src>

<mosaic_0001>
module attributes {stable_mosaic.version = 11 : i64} {
  func.func @_cost_volume_kernel(%arg0: i32, %arg1: i32, %arg2: i32, %arg3: memref<1x4x16x128xf32, #tpu.memory_space<vmem>>, %arg4: memref<1x4x16x128xf32, #tpu.memory_space<vmem>>, %arg5: memref<1x8x4x16x128xf32, #tpu.memory_space<vmem>>) attributes {dimension_semantics = [#tpu.dimension_semantics<parallel>, #tpu.dimension_semantics<parallel>, #tpu.dimension_semantics<arbitrary>], iteration_bounds = array<i64: 2, 1, 1>, scalar_prefetch = 0 : i64, scratch_operands = 0 : i64, tpu.core_type = #tpu.core_type<tc>, window_params = [{transform_indices = @transform_0, window_bounds = array<i64: 1, 4, 16, 128>}, {transform_indices = @transform_1, window_bounds = array<i64: 1, 4, 16, 128>}, {transform_indices = @transform_2, window_bounds = array<i64: 1, 8, 4, 16, 128>}]} {
    %c0 = arith.constant 0 : index
    %c0_0 = arith.constant 0 : index
    %c0_1 = arith.constant 0 : index
    %c0_2 = arith.constant 0 : index
    %0 = vector.load %arg3[%c0, %c0_0, %c0_1, %c0_2] : memref<1x4x16x128xf32, #tpu.memory_space<vmem>>, vector<1x4x16x128xf32>
    %1 = vector.shape_cast %0 : vector<1x4x16x128xf32> to vector<4x16x128xf32>
    %c0_3 = arith.constant 0 : index
    %c0_4 = arith.constant 0 : index
    %c0_5 = arith.constant 0 : index
    %c0_6 = arith.constant 0 : index
    %2 = vector.load %arg4[%c0_3, %c0_4, %c0_5, %c0_6] : memref<1x4x16x128xf32, #tpu.memory_space<vmem>>, vector<1x4x16x128xf32>
    %3 = vector.shape_cast %2 : vector<1x4x16x128xf32> to vector<4x16x128xf32>
    %4 = tpu.iota {dimensions = array<i32: 2>} : vector<1x1x128xi32>
    %c4_i32 = arith.constant 4 : i32
    %5 = arith.muli %arg2, %c4_i32 : i32
    %c0_i32 = arith.constant 0 : i32
    %6 = arith.addi %5, %c0_i32 : i32
    %c3_i32 = arith.constant 3 : i32
    %7 = arith.subi %c3_i32, %6 : i32
    %8 = tpu.dynamic_rotate %3 by %7 dim 2 : vector<4x16x128xf32>, i32 -> vector<4x16x128xf32>
    %9 = vector.broadcast %7 : i32 to vector<1x1x128xi32>
    %10 = arith.cmpi sge, %4, %9 : vector<1x1x128xi32>
    %cst = arith.constant 0.000000e+00 : f32
    %11 = vector.shape_cast %10 : vector<1x1x128xi1> to vector<1x1x128xi1>
    %12 = vector.broadcast %11 : vector<1x1x128xi1> to vector<4x16x128xi1>
    %13 = vector.broadcast %cst : f32 to vector<4x16x128xf32>
    %14 = arith.select %12, %1, %13 : vector<4x16x128xi1>, vector<4x16x128xf32>
    %c0_7 = arith.constant 0 : index
    %c0_8 = arith.constant 0 : index
    %c0_9 = arith.constant 0 : index
    %c0_10 = arith.constant 0 : index
    %c0_11 = arith.constant 0 : index
    %15 = vector.load %arg5[%c0_7, %c0_8, %c0_9, %c0_10, %c0_11] : memref<1x8x4x16x128xf32, #tpu.memory_space<vmem>>, vector<1x4x1x16x128xf32>
    %16 = vector.shape_cast %15 : vector<1x4x1x16x128xf32> to vector<4x16x128xf32>
    %17 = vector.shape_cast %14 : vector<4x16x128xf32> to vector<1x4x1x16x128xf32>
    tpu.vector_store %arg5[%c0_7, %c0_8, %c0_9, %c0_10, %c0_11], %17 {strides = array<i32>} : memref<1x8x4x16x128xf32, #tpu.memory_space<vmem>>, vector<1x4x1x16x128xf32>,
    %cst_12 = arith.constant 0.000000e+00 : f32
    %18 = vector.shape_cast %10 : vector<1x1x128xi1> to vector<1x1x128xi1>
    %19 = vector.broadcast %18 : vector<1x1x128xi1> to vector<4x16x128xi1>
    %20 = vector.broadcast %cst_12 : f32 to vector<4x16x128xf32>
    %21 = arith.select %19, %8, %20 : vector<4x16x128xi1>, vector<4x16x128xf32>
    %c0_13 = arith.constant 0 : index
    %c4 = arith.constant 4 : index
    %c0_14 = arith.constant 0 : index
    %c0_15 = arith.constant 0 : index
    %c0_16 = arith.constant 0 : index
    %22 = vector.load %arg5[%c0_13, %c4, %c0_14, %c0_15, %c0_16] : memref<1x8x4x16x128xf32, #tpu.memory_space<vmem>>, vector<1x4x1x16x128xf32>
    %23 = vector.shape_cast %22 : vector<1x4x1x16x128xf32> to vector<4x16x128xf32>
    %24 = vector.shape_cast %21 : vector<4x16x128xf32> to vector<1x4x1x16x128xf32>
    tpu.vector_store %arg5[%c0_13, %c4, %c0_14, %c0_15, %c0_16], %24 {strides = array<i32>} : memref<1x8x4x16x128xf32, #tpu.memory_space<vmem>>, vector<1x4x1x16x128xf32>,
    %c4_i32_17 = arith.constant 4 : i32
    %25 = arith.muli %arg2, %c4_i32_17 : i32
    %c1_i32 = arith.constant 1 : i32
    %26 = arith.addi %25, %c1_i32 : i32
    %c3_i32_18 = arith.constant 3 : i32
    %27 = arith.subi %c3_i32_18, %26 : i32
    %28 = tpu.dynamic_rotate %3 by %27 dim 2 : vector<4x16x128xf32>, i32 -> vector<4x16x128xf32>
    %29 = vector.broadcast %27 : i32 to vector<1x1x128xi32>
    %30 = arith.cmpi sge, %4, %29 : vector<1x1x128xi32>
    %cst_19 = arith.constant 0.000000e+00 : f32
    %31 = vector.shape_cast %30 : vector<1x1x128xi1> to vector<1x1x128xi1>
    %32 = vector.broadcast %31 : vector<1x1x128xi1> to vector<4x16x128xi1>
    %33 = vector.broadcast %cst_19 : f32 to vector<4x16x128xf32>
    %34 = arith.select %32, %1, %33 : vector<4x16x128xi1>, vector<4x16x128xf32>
    %c0_20 = arith.constant 0 : index
    %c0_21 = arith.constant 0 : index
    %c1 = arith.constant 1 : index
    %c0_22 = arith.constant 0 : index
    %c0_23 = arith.constant 0 : index
    %35 = vector.load %arg5[%c0_20, %c0_21, %c1, %c0_22, %c0_23] : memref<1x8x4x16x128xf32, #tpu.memory_space<vmem>>, vector<1x4x1x16x128xf32>
    %36 = vector.shape_cast %35 : vector<1x4x1x16x128xf32> to vector<4x16x128xf32>
    %37 = vector.shape_cast %34 : vector<4x16x128xf32> to vector<1x4x1x16x128xf32>
    tpu.vector_store %arg5[%c0_20, %c0_21, %c1, %c0_22, %c0_23], %37 {strides = array<i32>} : memref<1x8x4x16x128xf32, #tpu.memory_space<vmem>>, vector<1x4x1x16x128xf32>,
    %cst_24 = arith.constant 0.000000e+00 : f32
    %38 = vector.shape_cast %30 : vector<1x1x128xi1> to vector<1x1x128xi1>
    %39 = vector.broadcast %38 : vector<1x1x128xi1> to vector<4x16x128xi1>
    %40 = vector.broadcast %cst_24 : f32 to vector<4x16x128xf32>
    %41 = arith.select %39, %28, %40 : vector<4x16x128xi1>, vector<4x16x128xf32>
    %c0_25 = arith.constant 0 : index
    %c4_26 = arith.constant 4 : index
    %c1_27 = arith.constant 1 : index
    %c0_28 = arith.constant 0 : index
    %c0_29 = arith.constant 0 : index
    %42 = vector.load %arg5[%c0_25, %c4_26, %c1_27, %c0_28, %c0_29] : memref<1x8x4x16x128xf32, #tpu.memory_space<vmem>>, vector<1x4x1x16x128xf32>
    %43 = vector.shape_cast %42 : vector<1x4x1x16x128xf32> to vector<4x16x128xf32>
    %44 = vector.shape_cast %41 : vector<4x16x128xf32> to vector<1x4x1x16x128xf32>
    tpu.vector_store %arg5[%c0_25, %c4_26, %c1_27, %c0_28, %c0_29], %44 {strides = array<i32>} : memref<1x8x4x16x128xf32, #tpu.memory_space<vmem>>, vector<1x4x1x16x128xf32>,
    %c4_i32_30 = arith.constant 4 : i32
    %45 = arith.muli %arg2, %c4_i32_30 : i32
    %c2_i32 = arith.constant 2 : i32
    %46 = arith.addi %45, %c2_i32 : i32
    %c3_i32_31 = arith.constant 3 : i32
    %47 = arith.subi %c3_i32_31, %46 : i32
    %48 = tpu.dynamic_rotate %3 by %47 dim 2 : vector<4x16x128xf32>, i32 -> vector<4x16x128xf32>
    %49 = vector.broadcast %47 : i32 to vector<1x1x128xi32>
    %50 = arith.cmpi sge, %4, %49 : vector<1x1x128xi32>
    %cst_32 = arith.constant 0.000000e+00 : f32
    %51 = vector.shape_cast %50 : vector<1x1x128xi1> to vector<1x1x128xi1>
    %52 = vector.broadcast %51 : vector<1x1x128xi1> to vector<4x16x128xi1>
    %53 = vector.broadcast %cst_32 : f32 to vector<4x16x128xf32>
    %54 = arith.select %52, %1, %53 : vector<4x16x128xi1>, vector<4x16x128xf32>
    %c0_33 = arith.constant 0 : index
    %c0_34 = arith.constant 0 : index
    %c2 = arith.constant 2 : index
    %c0_35 = arith.constant 0 : index
    %c0_36 = arith.constant 0 : index
    %55 = vector.load %arg5[%c0_33, %c0_34, %c2, %c0_35, %c0_36] : memref<1x8x4x16x128xf32, #tpu.memory_space<vmem>>, vector<1x4x1x16x128xf32>
    %56 = vector.shape_cast %55 : vector<1x4x1x16x128xf32> to vector<4x16x128xf32>
    %57 = vector.shape_cast %54 : vector<4x16x128xf32> to vector<1x4x1x16x128xf32>
    tpu.vector_store %arg5[%c0_33, %c0_34, %c2, %c0_35, %c0_36], %57 {strides = array<i32>} : memref<1x8x4x16x128xf32, #tpu.memory_space<vmem>>, vector<1x4x1x16x128xf32>,
    %cst_37 = arith.constant 0.000000e+00 : f32
    %58 = vector.shape_cast %50 : vector<1x1x128xi1> to vector<1x1x128xi1>
    %59 = vector.broadcast %58 : vector<1x1x128xi1> to vector<4x16x128xi1>
    %60 = vector.broadcast %cst_37 : f32 to vector<4x16x128xf32>
    %61 = arith.select %59, %48, %60 : vector<4x16x128xi1>, vector<4x16x128xf32>
    %c0_38 = arith.constant 0 : index
    %c4_39 = arith.constant 4 : index
    %c2_40 = arith.constant 2 : index
    %c0_41 = arith.constant 0 : index
    %c0_42 = arith.constant 0 : index
    %62 = vector.load %arg5[%c0_38, %c4_39, %c2_40, %c0_41, %c0_42] : memref<1x8x4x16x128xf32, #tpu.memory_space<vmem>>, vector<1x4x1x16x128xf32>
    %63 = vector.shape_cast %62 : vector<1x4x1x16x128xf32> to vector<4x16x128xf32>
    %64 = vector.shape_cast %61 : vector<4x16x128xf32> to vector<1x4x1x16x128xf32>
    tpu.vector_store %arg5[%c0_38, %c4_39, %c2_40, %c0_41, %c0_42], %64 {strides = array<i32>} : memref<1x8x4x16x128xf32, #tpu.memory_space<vmem>>, vector<1x4x1x16x128xf32>,
    %c4_i32_43 = arith.constant 4 : i32
    %65 = arith.muli %arg2, %c4_i32_43 : i32
    %c3_i32_44 = arith.constant 3 : i32
    %66 = arith.addi %65, %c3_i32_44 : i32
    %c3_i32_45 = arith.constant 3 : i32
    %67 = arith.subi %c3_i32_45, %66 : i32
    %68 = tpu.dynamic_rotate %3 by %67 dim 2 : vector<4x16x128xf32>, i32 -> vector<4x16x128xf32>
    %69 = vector.broadcast %67 : i32 to vector<1x1x128xi32>
    %70 = arith.cmpi sge, %4, %69 : vector<1x1x128xi32>
    %cst_46 = arith.constant 0.000000e+00 : f32
    %71 = vector.shape_cast %70 : vector<1x1x128xi1> to vector<1x1x128xi1>
    %72 = vector.broadcast %71 : vector<1x1x128xi1> to vector<4x16x128xi1>
    %73 = vector.broadcast %cst_46 : f32 to vector<4x16x128xf32>
    %74 = arith.select %72, %1, %73 : vector<4x16x128xi1>, vector<4x16x128xf32>
    %c0_47 = arith.constant 0 : index
    %c0_48 = arith.constant 0 : index
    %c3 = arith.constant 3 : index
    %c0_49 = arith.constant 0 : index
    %c0_50 = arith.constant 0 : index
    %75 = vector.load %arg5[%c0_47, %c0_48, %c3, %c0_49, %c0_50] : memref<1x8x4x16x128xf32, #tpu.memory_space<vmem>>, vector<1x4x1x16x128xf32>
    %76 = vector.shape_cast %75 : vector<1x4x1x16x128xf32> to vector<4x16x128xf32>
    %77 = vector.shape_cast %74 : vector<4x16x128xf32> to vector<1x4x1x16x128xf32>
    tpu.vector_store %arg5[%c0_47, %c0_48, %c3, %c0_49, %c0_50], %77 {strides = array<i32>} : memref<1x8x4x16x128xf32, #tpu.memory_space<vmem>>, vector<1x4x1x16x128xf32>,
    %cst_51 = arith.constant 0.000000e+00 : f32
    %78 = vector.shape_cast %70 : vector<1x1x128xi1> to vector<1x1x128xi1>
    %79 = vector.broadcast %78 : vector<1x1x128xi1> to vector<4x16x128xi1>
    %80 = vector.broadcast %cst_51 : f32 to vector<4x16x128xf32>
    %81 = arith.select %79, %68, %80 : vector<4x16x128xi1>, vector<4x16x128xf32>
    %c0_52 = arith.constant 0 : index
    %c4_53 = arith.constant 4 : index
    %c3_54 = arith.constant 3 : index
    %c0_55 = arith.constant 0 : index
    %c0_56 = arith.constant 0 : index
    %82 = vector.load %arg5[%c0_52, %c4_53, %c3_54, %c0_55, %c0_56] : memref<1x8x4x16x128xf32, #tpu.memory_space<vmem>>, vector<1x4x1x16x128xf32>
    %83 = vector.shape_cast %82 : vector<1x4x1x16x128xf32> to vector<4x16x128xf32>
    %84 = vector.shape_cast %81 : vector<4x16x128xf32> to vector<1x4x1x16x128xf32>
    tpu.vector_store %arg5[%c0_52, %c4_53, %c3_54, %c0_55, %c0_56], %84 {strides = array<i32>} : memref<1x8x4x16x128xf32, #tpu.memory_space<vmem>>, vector<1x4x1x16x128xf32>,
    return
  }
  func.func @transform_0(%arg0: i32, %arg1: i32, %arg2: i32) -> (i32, i32, i32, i32) {
    %c0_i32 = arith.constant 0 : i32
    %c0_i32_0 = arith.constant 0 : i32
    %c0_i32_1 = arith.constant 0 : i32
    return %arg0, %c0_i32, %arg1, %c0_i32_0 : i32, i32, i32, i32
  }
  func.func @transform_1(%arg0: i32, %arg1: i32, %arg2: i32) -> (i32, i32, i32, i32) {
    %c0_i32 = arith.constant 0 : i32
    %c0_i32_0 = arith.constant 0 : i32
    %c0_i32_1 = arith.constant 0 : i32
    return %arg0, %c0_i32, %arg1, %c0_i32_0 : i32, i32, i32, i32
  }
  func.func @transform_2(%arg0: i32, %arg1: i32, %arg2: i32) -> (i32, i32, i32, i32, i32) {
    %c0_i32 = arith.constant 0 : i32
    %c0_i32_0 = arith.constant 0 : i32
    %c0_i32_1 = arith.constant 0 : i32
    return %arg0, %c0_i32, %arg2, %arg1, %c0_i32_0 : i32, i32, i32, i32, i32
  }
}

</mosaic_0001>

<llo_original>
// kernel: tpu_custom_call.1
$region0: #{tpu_custom_call.1}
  #allocation0 [shape = 'u32[]', space=smem, size = 0x4, offset = 0x4, fixed_abs, tag = 'smem constant byte address 0x4 - core index']
  #allocation1 [shape = 'u32[144,128]{1,0:T(1,128)}', space=vmem, size = 0x12000, scoped, tag = 'internal scratch']
  %s0 = inlined_call_operand.hbm [shape: f32[2,4,16,128], index: 0, kind: input, shape index: {}]
  %s1 = inlined_call_operand.hbm [shape: f32[2,4,16,128], index: 1, kind: input, shape index: {}]
  %s2 = inlined_call_operand.hbm [shape: f32[2,8,4,16,128], index: 2, kind: output, shape index: {}]
  %s3 = sld [smem:[#allocation0]]
  $region49: #{tpu_custom_call.1} parent=0
    _
  %s5 = ssub.s32 1, %s3
  %s6 = scalar_select 0, %s5, %s3
  $region1: #{tpu_custom_call.1} parent=0
    #allocation2 [shape = 'u8[65536]{0}', space=vmem, size = 0x10000, scoped, tag = 'input window, operand 0']
    #allocation3 [shape = 's32[2]{0}', space=sflag, size = 0x8, scoped, tag = 'scoped memory for tpu_custom_call.1']
    #allocation4 [shape = 's32[2]{0}', space=sflag, size = 0x8, scoped, tag = 'scoped memory for tpu_custom_call.1']
    #allocation5 [shape = 'u8[65536]{0}', space=vmem, size = 0x10000, scoped, tag = 'input window, operand 1']
    #allocation6 [shape = 's32[2]{0}', space=sflag, size = 0x8, scoped, tag = 'scoped memory for tpu_custom_call.1']
    #allocation7 [shape = 'u8[524288]{0}', space=vmem, size = 0x80000, scoped, tag = 'output window, operand 0']
    %7 = vsyncpa [#allocation3], 0
    %s8 = scalar_lea.sflag [#allocation3], 1
    %9 = vsyncpa %s8, 0
    %10 = vsyncpa [#allocation6], 0
    %s11 = scalar_lea.sflag [#allocation6], 1
    %12 = vsyncpa %s11, 0
    %13 = vsyncpa [#allocation4], 0
    %s14 = scalar_lea.sflag [#allocation4], 1
    %15 = vsyncpa %s14, 0
    loop: start=0, step=1, limit=4
    $region2: #{tpu_custom_call.1} parent=1 // loop_pre_header
      _
    $region3: #{tpu_custom_call.1} parent=1 // loop_header
      %s17 = sphi 0, %s21
      %p18 = scmp.ge.s32.totalorder %s17, 4
      %s24 = sphi 0, %s43
      %s25 = sphi 0, %s39
      %s26 = sphi 0, %s35
      %s27 = sphi 0, %s24
      %s28 = sphi 0, %s25
      %s29 = sphi 0, %s26
      %s30 = sphi 0, %s27
      %s31 = sphi 0, %s28
      %s32 = sphi 0, %s29
      %s48 = sphi 0, %s50
      %s51 = sphi 0, %s48
      %s52 = sphi 0, %s51
      %s68 = sphi 0, %s52
      %s76 = sphi 0, %s78
      %s79 = sphi 0, %s76
      %s80 = sphi 0, %s79
      %s96 = sphi 0, %s80
      %s106 = sphi 0, %s108
      %s109 = sphi 0, %s106
      %s110 = sphi 0, %s109
      %s126 = sphi 0, %s110
    $region4: #{tpu_custom_call.1} parent=1 // loop_header_branch
      %20 = sbr.rel (%p18) target = $region8
    $region5: #{tpu_custom_call.1} parent=1 // loop_body
      %s22 = ssub.s32 %s17, 1
      %s23 = ssub.s32 %s17, 2
      %s33 = sadd.s32 1, %s26
      %p34 = scmp.ge.s32.totalorder %s33, 1
      %s35 = scalar_select %p34, 0, %s33
      %s36 = sadd.s32 1, %s25
      %s37 = scalar_select %p34, %s36, %s25
      %p38 = scmp.ge.s32.totalorder %s37, 1
      %s39 = scalar_select %p38, 0, %s37
      %s40 = sadd.s32 1, %s24
      %s41 = scalar_select %p38, %s40, %s24
      %p42 = scmp.ge.s32.totalorder %s41, 2
      %s43 = scalar_select %p42, 0, %s41
      %s44 = ssub.s32 %s24, %s43
      %s45 = ssub.s32 %s25, %s39
      %s46 = sor.u32 %s44, %s45
      %p47 = scmp.eq.s32.totalorder %s46, 0
      %s49 = sadd.s32 %s48, 1
      %s50 = scalar_select %p47, %s48, %s49
      %p53 = pneg %p47
      %p54 = scmp.eq.s32.totalorder %s17, 1
      %p55 = por %p53, %p54
      %p56 = scmp.ne.s32.totalorder %s48, %s51
      %p57 = scmp.eq.s32.totalorder %s17, 0
      %p58 = por %p56, %p57
      %p59 = scmp.ne.s32.totalorder %s48, %s51
      %p60 = scmp.eq.s32.totalorder %s22, 1
      %p61 = por %p59, %p60
      %p62 = scmp.ne.s32.totalorder %s51, %s52
      %p63 = scmp.eq.s32.totalorder %s22, 0
      %p64 = por %p62, %p63
      %p65 = scmp.ne.s32.totalorder %s51, %s52
      %p66 = scmp.eq.s32.totalorder %s23, 1
      %p67 = por %p65, %p66
      %p69 = scmp.ne.s32.totalorder %s52, %s68
      %p70 = scmp.eq.s32.totalorder %s23, 0
      %p71 = por %p69, %p70
      %s72 = ssub.s32 %s24, %s43
      %s73 = ssub.s32 %s25, %s39
      %s74 = sor.u32 %s72, %s73
      %p75 = scmp.eq.s32.totalorder %s74, 0
      %s77 = sadd.s32 %s76, 1
      %s78 = scalar_select %p75, %s76, %s77
      %p81 = pneg %p75
      %p82 = scmp.eq.s32.totalorder %s17, 1
      %p83 = por %p81, %p82
      %p84 = scmp.ne.s32.totalorder %s76, %s79
      %p85 = scmp.eq.s32.totalorder %s17, 0
      %p86 = por %p84, %p85
      %p87 = scmp.ne.s32.totalorder %s76, %s79
      %p88 = scmp.eq.s32.totalorder %s22, 1
      %p89 = por %p87, %p88
      %p90 = scmp.ne.s32.totalorder %s79, %s80
      %p91 = scmp.eq.s32.totalorder %s22, 0
      %p92 = por %p90, %p91
      %p93 = scmp.ne.s32.totalorder %s79, %s80
      %p94 = scmp.eq.s32.totalorder %s23, 1
      %p95 = por %p93, %p94
      %p97 = scmp.ne.s32.totalorder %s80, %s96
      %p98 = scmp.eq.s32.totalorder %s23, 0
      %p99 = por %p97, %p98
      %s100 = ssub.s32 %s24, %s43
      %s101 = ssub.s32 %s26, %s35
      %s102 = sor.u32 %s100, %s101
      %s103 = ssub.s32 %s25, %s39
      %s104 = sor.u32 %s102, %s103
      %p105 = scmp.eq.s32.totalorder %s104, 0
      %s107 = sadd.s32 %s106, 1
      %s108 = scalar_select %p105, %s106, %s107
      %p111 = pneg %p105
      %p112 = scmp.eq.s32.totalorder %s17, 1
      %p113 = por %p111, %p112
      %p114 = scmp.ne.s32.totalorder %s106, %s109
      %p115 = scmp.eq.s32.totalorder %s17, 0
      %p116 = por %p114, %p115
      %p117 = scmp.ne.s32.totalorder %s106, %s109
      %p118 = scmp.eq.s32.totalorder %s22, 1
      %p119 = por %p117, %p118
      %p120 = scmp.ne.s32.totalorder %s109, %s110
      %p121 = scmp.eq.s32.totalorder %s22, 0
      %p122 = por %p120, %p121
      %p123 = scmp.ne.s32.totalorder %s109, %s110
      %p124 = scmp.eq.s32.totalorder %s23, 1
      %p125 = por %p123, %p124
      %p127 = scmp.ne.s32.totalorder %s110, %s126
      %p128 = scmp.eq.s32.totalorder %s23, 0
      %p129 = por %p127, %p128
      %p130 = scmp.le.s32.totalorder 1, %s17
      %p131 = scmp.lt.s32.totalorder %s17, 3
      %p132 = pnand %p130, %p131
      %p133 = pneg %p132
      // Predicated region
      $region9: #{tpu_custom_call.1} parent=5 // pred_check
        _
      $region10: #{tpu_custom_call.1} parent=5 // pred_check_branch
        %135 = sbr.rel (%p132) target = $region12
      $region11: #{tpu_custom_call.1} parent=5 // pred_region
        %s136 = ssub.s32 %s17, 1
      $region12: #{tpu_custom_call.1} parent=5 // pred_fallthru
        _
      %p137 = scmp.lt.s32.totalorder %s17, 2
      // Predicated region
      $region13: #{tpu_custom_call.1} parent=5 // pred_check
        %p138 = pneg %p137
      $region14: #{tpu_custom_call.1} parent=5 // pred_check_branch
        %140 = sbr.rel (%p138) target = $region16
      $region15: #{tpu_custom_call.1} parent=5 // pred_region
        // Predicated region
        $region17: #{tpu_custom_call.1} parent=15 // pred_check
          %p141 = pneg %p58
        $region18: #{tpu_custom_call.1} parent=15 // pred_check_branch
          %143 = sbr.rel (%p141) target = $region20
        $region19: #{tpu_custom_call.1} parent=15 // pred_region
          %s144 = sand.u32 %s48, 1
          %s145 = scalar_lea.sflag [#allocation3], %s144
          %s146 = sand.u32 %s48, 1
          %s147 = smul.addr %s146, 64
          %s148 = scalar_lea.vmem [#allocation2], %s147
          %s149 = smul.u32 2, %s25
          %s151 = ssub.s32 1024, 1024
          %152 = vsyncadd %s145, %s151
          %s153 = smul.addr %s24, 8
          %s154 = sadd.s32 %s149, %s153
          %s155 = smul.addr %s154, 128
          %s156 = scalar_lea.hbm %s0, %s155
          %s157 = sshll.u32 %s148, 4
          %s158 = int_to_ptr.vmem [resolvable:$true] %s157
          %163 = dma.hbm_to_vmem [thread:$0]  %s156, 1024, %s158, %s145, 128, 128, 8
        $region20: #{tpu_custom_call.1} parent=15 // pred_fallthru
          _
        // Predicated region
        $region21: #{tpu_custom_call.1} parent=15 // pred_check
          %p164 = pneg %p86
        $region22: #{tpu_custom_call.1} parent=15 // pred_check_branch
          %166 = sbr.rel (%p164) target = $region24
        $region23: #{tpu_custom_call.1} parent=15 // pred_region
          %s167 = sand.u32 %s76, 1
          %s168 = scalar_lea.sflag [#allocation6], %s167
          %s169 = sand.u32 %s76, 1
          %s170 = smul.addr %s169, 64
          %s171 = scalar_lea.vmem [#allocation5], %s170
          %s172 = smul.u32 2, %s25
          %s174 = ssub.s32 1024, 1024
          %175 = vsyncadd %s168, %s174
          %s176 = smul.addr %s24, 8
          %s177 = sadd.s32 %s172, %s176
          %s178 = smul.addr %s177, 128
          %s179 = scalar_lea.hbm %s1, %s178
          %s180 = sshll.u32 %s171, 4
          %s181 = int_to_ptr.vmem [resolvable:$true] %s180
          %186 = dma.hbm_to_vmem [thread:$0]  %s179, 1024, %s181, %s168, 128, 128, 8
        $region24: #{tpu_custom_call.1} parent=15 // pred_fallthru
          _
      $region16: #{tpu_custom_call.1} parent=5 // pred_fallthru
        _
      %p187 = scmp.le.s32.totalorder 1, %s17
      %p188 = scmp.lt.s32.totalorder %s17, 3
      %p189 = pnand %p187, %p188
      %p190 = pneg %p189
      // Predicated region
      $region25: #{tpu_custom_call.1} parent=5 // pred_check
        _
      $region26: #{tpu_custom_call.1} parent=5 // pred_check_branch
        %192 = sbr.rel (%p189) target = $region28
      $region27: #{tpu_custom_call.1} parent=5 // pred_region
        %s193 = ssub.s32 %s17, 1
        %s194 = sand.u32 %s51, 1
        %s195 = scalar_lea.sflag [#allocation3], %s194
        %s196 = sand.u32 %s51, 1
        %s197 = smul.addr %s196, 64
        %s198 = scalar_lea.vmem [#allocation2], %s197
        // Predicated region
        $region29: #{tpu_custom_call.1} parent=27 // pred_check
          %p199 = pneg %p64
        $region30: #{tpu_custom_call.1} parent=27 // pred_check_branch
          %201 = sbr.rel (%p199) target = $region32
        $region31: #{tpu_custom_call.1} parent=27 // pred_region
          %202 = dma.done %s195, 1024
        $region32: #{tpu_custom_call.1} parent=27 // pred_fallthru
          _
        %s203 = sand.u32 %s79, 1
        %s204 = scalar_lea.sflag [#allocation6], %s203
        %s205 = sand.u32 %s79, 1
        %s206 = smul.addr %s205, 64
        %s207 = scalar_lea.vmem [#allocation5], %s206
        // Predicated region
        $region33: #{tpu_custom_call.1} parent=27 // pred_check
          %p208 = pneg %p92
        $region34: #{tpu_custom_call.1} parent=27 // pred_check_branch
          %210 = sbr.rel (%p208) target = $region36
        $region35: #{tpu_custom_call.1} parent=27 // pred_region
          %211 = dma.done %s204, 1024
        $region36: #{tpu_custom_call.1} parent=27 // pred_fallthru
          _
        %s212 = sand.u32 %s51, 1
        %s213 = scalar_lea.sflag [#allocation3], %s212
        %s214 = sand.u32 %s51, 1
        %s215 = smul.addr %s214, 64
        %s216 = scalar_lea.vmem [#allocation2], %s215
        %p217 = pneg %p64
        %p218 = pneg %p61
        %s219 = sand.u32 %s79, 1
        %s220 = scalar_lea.sflag [#allocation6], %s219
        %s221 = sand.u32 %s79, 1
        %s222 = smul.addr %s221, 64
        %s223 = scalar_lea.vmem [#allocation5], %s222
        %p224 = pneg %p92
        %p225 = pneg %p89
        %p226 = pneg %p122
        %p227 = pneg %p119
        %s228 = sand.u32 %s109, 1
        %s229 = scalar_lea.sflag [#allocation4], %s228
        %s230 = sand.u32 %s109, 1
        %s231 = smul.addr %s230, 512
        %s232 = scalar_lea.vmem [#allocation7], %s231
        %s233 = smul.u32 2, %s28
        %s234 = smul.u32 2, %s28
        %s235 = smul.u32 4, %s29
        %s236 = smul.u32 2, %s28
        %v237 = vld [vmem:[%s198] sm:$0xff]
        %v238 = vld [vmem:[%s198 + $0x8] sm:$0xff]
        %v239 = vld [vmem:[%s198 + $0x10] sm:$0xff]
        %v240 = vld [vmem:[%s198 + $0x18] sm:$0xff]
        %v241 = vld [vmem:[%s198 + $0x20] sm:$0xff]
        %v242 = vld [vmem:[%s198 + $0x28] sm:$0xff]
        %v243 = vld [vmem:[%s198 + $0x30] sm:$0xff]
        %v244 = vld [vmem:[%s198 + $0x38] sm:$0xff]
        %v245 = vld [vmem:[%s207] sm:$0xff]
        %v246 = vld [vmem:[%s207 + $0x8] sm:$0xff]
        %v247 = vld [vmem:[%s207 + $0x10] sm:$0xff]
        %v248 = vld [vmem:[%s207 + $0x18] sm:$0xff]
        %v249 = vld [vmem:[%s207 + $0x20] sm:$0xff]
        %v250 = vld [vmem:[%s207 + $0x28] sm:$0xff]
        %v251 = vld [vmem:[%s207 + $0x30] sm:$0xff]
        %v252 = vld [vmem:[%s207 + $0x38] sm:$0xff]
        %v253 = vlaneseq
        %v254 = vand.u32 %v253, 127
        %s255 = smul.u32 %s29, 4
        %s256 = ssub.s32 3, %s255
        %s257 = sand.u32 %s256, 127
        %s258 = sand.u32 %s257, 127
        %259 = vrot.lane.b32.xlu0 %v245, %s258
        %v260 = vpop.permute.xlu0 %259
        %261 = vrot.lane.b32.xlu0 %v246, %s258
        %v262 = vpop.permute.xlu0 %261
        %263 = vrot.lane.b32.xlu0 %v247, %s258
        %v264 = vpop.permute.xlu0 %263
        %265 = vrot.lane.b32.xlu0 %v248, %s258
        %v266 = vpop.permute.xlu0 %265
        %267 = vrot.lane.b32.xlu0 %v249, %s258
        %v268 = vpop.permute.xlu0 %267
        %269 = vrot.lane.b32.xlu0 %v250, %s258
        %v270 = vpop.permute.xlu0 %269
        %271 = vrot.lane.b32.xlu0 %v251, %s258
        %v272 = vpop.permute.xlu0 %271
        %273 = vrot.lane.b32.xlu0 %v252, %s258
        %v274 = vpop.permute.xlu0 %273
        %v275 = vstv %s256
        %vm276 = vcmp.ge.s32.totalorder %v254, %v275
        %v277 = vsel %vm276, 1, 0
        %vm278 = vcmp.eq.s32.totalorder %v277, 1
        %v279 = vsel %vm278, %v237, 0.0
        %v280 = vsel %vm278, %v238, 0.0
        %v281 = vsel %vm278, %v239, 0.0
        %v282 = vsel %vm278, %v240, 0.0
        %v283 = vsel %vm278, %v241, 0.0
        %v284 = vsel %vm278, %v242, 0.0
        %v285 = vsel %vm278, %v243, 0.0
        %v286 = vsel %vm278, %v244, 0.0
        %287 = vst [vmem:[%s232] sm:$0xff] %v279
        %288 = vst [vmem:[%s232 + $0x8] sm:$0xff] %v280
        %289 = vst [vmem:[%s232 + $0x40] sm:$0xff] %v281
        %290 = vst [vmem:[%s232 + $0x48] sm:$0xff] %v282
        %291 = vst [vmem:[%s232 + $0x80] sm:$0xff] %v283
        %292 = vst [vmem:[%s232 + $0x88] sm:$0xff] %v284
        %293 = vst [vmem:[%s232 + $0xc0] sm:$0xff] %v285
        %294 = vst [vmem:[%s232 + $0xc8] sm:$0xff] %v286
        %v295 = vsel %vm278, %v260, 0.0
        %v296 = vsel %vm278, %v262, 0.0
        %v297 = vsel %vm278, %v264, 0.0
        %v298 = vsel %vm278, %v266, 0.0
        %v299 = vsel %vm278, %v268, 0.0
        %v300 = vsel %vm278, %v270, 0.0
        %v301 = vsel %vm278, %v272, 0.0
        %v302 = vsel %vm278, %v274, 0.0
        %s303 = scalar_lea.vmem %s232, 256 [#allocation7]
        %304 = vst [vmem:[%s303] sm:$0xff] %v295
        %305 = vst [vmem:[%s303 + $0x8] sm:$0xff] %v296
        %306 = vst [vmem:[%s303 + $0x40] sm:$0xff] %v297
        %307 = vst [vmem:[%s303 + $0x48] sm:$0xff] %v298
        %308 = vst [vmem:[%s303 + $0x80] sm:$0xff] %v299
        %309 = vst [vmem:[%s303 + $0x88] sm:$0xff] %v300
        %310 = vst [vmem:[%s303 + $0xc0] sm:$0xff] %v301
        %311 = vst [vmem:[%s303 + $0xc8] sm:$0xff] %v302
        %s312 = ssub.s32 2, %s255
        %s313 = sand.u32 %s312, 127
        %s314 = sand.u32 %s313, 127
        %315 = vrot.lane.b32.xlu0 %v245, %s314
        %v316 = vpop.permute.xlu0 %315
        %317 = vrot.lane.b32.xlu0 %v246, %s314
        %v318 = vpop.permute.xlu0 %317
        %319 = vrot.lane.b32.xlu0 %v247, %s314
        %v320 = vpop.permute.xlu0 %319
        %321 = vrot.lane.b32.xlu0 %v248, %s314
        %v322 = vpop.permute.xlu0 %321
        %323 = vrot.lane.b32.xlu0 %v249, %s314
        %v324 = vpop.permute.xlu0 %323
        %325 = vrot.lane.b32.xlu0 %v250, %s314
        %v326 = vpop.permute.xlu0 %325
        %327 = vrot.lane.b32.xlu0 %v251, %s314
        %v328 = vpop.permute.xlu0 %327
        %329 = vrot.lane.b32.xlu0 %v252, %s314
        %v330 = vpop.permute.xlu0 %329
        %v331 = vstv %s312
        %vm332 = vcmp.ge.s32.totalorder %v254, %v331
        %v333 = vsel %vm332, 1, 0
        %vm334 = vcmp.eq.s32.totalorder %v333, 1
        %v335 = vsel %vm334, %v237, 0.0
        %v336 = vsel %vm334, %v238, 0.0
        %v337 = vsel %vm334, %v239, 0.0
        %v338 = vsel %vm334, %v240, 0.0
        %v339 = vsel %vm334, %v241, 0.0
        %v340 = vsel %vm334, %v242, 0.0
        %v341 = vsel %vm334, %v243, 0.0
        %v342 = vsel %vm334, %v244, 0.0
        %s343 = scalar_lea.vmem %s232, 16 [#allocation7]
        %344 = vst [vmem:[%s343] sm:$0xff] %v335
        %345 = vst [vmem:[%s343 + $0x8] sm:$0xff] %v336
        %346 = vst [vmem:[%s343 + $0x40] sm:$0xff] %v337
        %347 = vst [vmem:[%s343 + $0x48] sm:$0xff] %v338
        %348 = vst [vmem:[%s343 + $0x80] sm:$0xff] %v339
        %349 = vst [vmem:[%s343 + $0x88] sm:$0xff] %v340
        %350 = vst [vmem:[%s343 + $0xc0] sm:$0xff] %v341
        %351 = vst [vmem:[%s343 + $0xc8] sm:$0xff] %v342
        %v352 = vsel %vm334, %v316, 0.0
        %v353 = vsel %vm334, %v318, 0.0
        %v354 = vsel %vm334, %v320, 0.0
        %v355 = vsel %vm334, %v322, 0.0
        %v356 = vsel %vm334, %v324, 0.0
        %v357 = vsel %vm334, %v326, 0.0
        %v358 = vsel %vm334, %v328, 0.0
        %v359 = vsel %vm334, %v330, 0.0
        %s360 = scalar_lea.vmem %s232, 272 [#allocation7]
        %361 = vst [vmem:[%s360] sm:$0xff] %v352
        %362 = vst [vmem:[%s360 + $0x8] sm:$0xff] %v353
        %363 = vst [vmem:[%s360 + $0x40] sm:$0xff] %v354
        %364 = vst [vmem:[%s360 + $0x48] sm:$0xff] %v355
        %365 = vst [vmem:[%s360 + $0x80] sm:$0xff] %v356
        %366 = vst [vmem:[%s360 + $0x88] sm:$0xff] %v357
        %367 = vst [vmem:[%s360 + $0xc0] sm:$0xff] %v358
        %368 = vst [vmem:[%s360 + $0xc8] sm:$0xff] %v359
        %s369 = ssub.s32 1, %s255
        %s370 = sand.u32 %s369, 127
        %s371 = sand.u32 %s370, 127
        %372 = vrot.lane.b32.xlu0 %v245, %s371
        %v373 = vpop.permute.xlu0 %372
        %374 = vrot.lane.b32.xlu0 %v246, %s371
        %v375 = vpop.permute.xlu0 %374
        %376 = vrot.lane.b32.xlu0 %v247, %s371
        %v377 = vpop.permute.xlu0 %376
        %378 = vrot.lane.b32.xlu0 %v248, %s371
        %v379 = vpop.permute.xlu0 %378
        %380 = vrot.lane.b32.xlu0 %v249, %s371
        %v381 = vpop.permute.xlu0 %380
        %382 = vrot.lane.b32.xlu0 %v250, %s371
        %v383 = vpop.permute.xlu0 %382
        %384 = vrot.lane.b32.xlu0 %v251, %s371
        %v385 = vpop.permute.xlu0 %384
        %386 = vrot.lane.b32.xlu0 %v252, %s371
        %v387 = vpop.permute.xlu0 %386
        %v388 = vstv %s369
        %vm389 = vcmp.ge.s32.totalorder %v254, %v388
        %v390 = vsel %vm389, 1, 0
        %vm391 = vcmp.eq.s32.totalorder %v390, 1
        %v392 = vsel %vm391, %v237, 0.0
        %v393 = vsel %vm391, %v238, 0.0
        %v394 = vsel %vm391, %v239, 0.0
        %v395 = vsel %vm391, %v240, 0.0
        %v396 = vsel %vm391, %v241, 0.0
        %v397 = vsel %vm391, %v242, 0.0
        %v398 = vsel %vm391, %v243, 0.0
        %v399 = vsel %vm391, %v244, 0.0
        %s400 = scalar_lea.vmem %s232, 32 [#allocation7]
        %401 = vst [vmem:[%s400] sm:$0xff] %v392
        %402 = vst [vmem:[%s400 + $0x8] sm:$0xff] %v393
        %403 = vst [vmem:[%s400 + $0x40] sm:$0xff] %v394
        %404 = vst [vmem:[%s400 + $0x48] sm:$0xff] %v395
        %405 = vst [vmem:[%s400 + $0x80] sm:$0xff] %v396
        %406 = vst [vmem:[%s400 + $0x88] sm:$0xff] %v397
        %407 = vst [vmem:[%s400 + $0xc0] sm:$0xff] %v398
        %408 = vst [vmem:[%s400 + $0xc8] sm:$0xff] %v399
        %v409 = vsel %vm391, %v373, 0.0
        %v410 = vsel %vm391, %v375, 0.0
        %v411 = vsel %vm391, %v377, 0.0
        %v412 = vsel %vm391, %v379, 0.0
        %v413 = vsel %vm391, %v381, 0.0
        %v414 = vsel %vm391, %v383, 0.0
        %v415 = vsel %vm391, %v385, 0.0
        %v416 = vsel %vm391, %v387, 0.0
        %s417 = scalar_lea.vmem %s232, 288 [#allocation7]
        %418 = vst [vmem:[%s417] sm:$0xff] %v409
        %419 = vst [vmem:[%s417 + $0x8] sm:$0xff] %v410
        %420 = vst [vmem:[%s417 + $0x40] sm:$0xff] %v411
        %421 = vst [vmem:[%s417 + $0x48] sm:$0xff] %v412
        %422 = vst [vmem:[%s417 + $0x80] sm:$0xff] %v413
        %423 = vst [vmem:[%s417 + $0x88] sm:$0xff] %v414
        %424 = vst [vmem:[%s417 + $0xc0] sm:$0xff] %v415
        %425 = vst [vmem:[%s417 + $0xc8] sm:$0xff] %v416
        %s426 = ssub.s32 0, %s255
        %s427 = sand.u32 %s426, 127
        %s428 = sand.u32 %s427, 127
        %429 = vrot.lane.b32.xlu0 %v245, %s428
        %v430 = vpop.permute.xlu0 %429
        %431 = vrot.lane.b32.xlu0 %v246, %s428
        %v432 = vpop.permute.xlu0 %431
        %433 = vrot.lane.b32.xlu0 %v247, %s428
        %v434 = vpop.permute.xlu0 %433
        %435 = vrot.lane.b32.xlu0 %v248, %s428
        %v436 = vpop.permute.xlu0 %435
        %437 = vrot.lane.b32.xlu0 %v249, %s428
        %v438 = vpop.permute.xlu0 %437
        %439 = vrot.lane.b32.xlu0 %v250, %s428
        %v440 = vpop.permute.xlu0 %439
        %441 = vrot.lane.b32.xlu0 %v251, %s428
        %v442 = vpop.permute.xlu0 %441
        %443 = vrot.lane.b32.xlu0 %v252, %s428
        %v444 = vpop.permute.xlu0 %443
        %v445 = vstv %s426
        %vm446 = vcmp.ge.s32.totalorder %v254, %v445
        %v447 = vsel %vm446, 1, 0
        %vm448 = vcmp.eq.s32.totalorder %v447, 1
        %v449 = vsel %vm448, %v237, 0.0
        %v450 = vsel %vm448, %v238, 0.0
        %v451 = vsel %vm448, %v239, 0.0
        %v452 = vsel %vm448, %v240, 0.0
        %v453 = vsel %vm448, %v241, 0.0
        %v454 = vsel %vm448, %v242, 0.0
        %v455 = vsel %vm448, %v243, 0.0
        %v456 = vsel %vm448, %v244, 0.0
        %s457 = scalar_lea.vmem %s232, 48 [#allocation7]
        %458 = vst [vmem:[%s457] sm:$0xff] %v449
        %459 = vst [vmem:[%s457 + $0x8] sm:$0xff] %v450
        %460 = vst [vmem:[%s457 + $0x40] sm:$0xff] %v451
        %461 = vst [vmem:[%s457 + $0x48] sm:$0xff] %v452
        %462 = vst [vmem:[%s457 + $0x80] sm:$0xff] %v453
        %463 = vst [vmem:[%s457 + $0x88] sm:$0xff] %v454
        %464 = vst [vmem:[%s457 + $0xc0] sm:$0xff] %v455
        %465 = vst [vmem:[%s457 + $0xc8] sm:$0xff] %v456
        %v466 = vsel %vm448, %v430, 0.0
        %v467 = vsel %vm448, %v432, 0.0
        %v468 = vsel %vm448, %v434, 0.0
        %v469 = vsel %vm448, %v436, 0.0
        %v470 = vsel %vm448, %v438, 0.0
        %v471 = vsel %vm448, %v440, 0.0
        %v472 = vsel %vm448, %v442, 0.0
        %v473 = vsel %vm448, %v444, 0.0
        %s474 = scalar_lea.vmem %s232, 304 [#allocation7]
        %475 = vst [vmem:[%s474] sm:$0xff] %v466
        %476 = vst [vmem:[%s474 + $0x8] sm:$0xff] %v467
        %477 = vst [vmem:[%s474 + $0x40] sm:$0xff] %v468
        %478 = vst [vmem:[%s474 + $0x48] sm:$0xff] %v469
        %479 = vst [vmem:[%s474 + $0x80] sm:$0xff] %v470
        %480 = vst [vmem:[%s474 + $0x88] sm:$0xff] %v471
        %481 = vst [vmem:[%s474 + $0xc0] sm:$0xff] %v472
        %482 = vst [vmem:[%s474 + $0xc8] sm:$0xff] %v473
        %s483 = sand.u32 %s109, 1
        %s484 = scalar_lea.sflag [#allocation4], %s483
        %s485 = sand.u32 %s109, 1
        %s486 = smul.addr %s485, 512
        %s487 = scalar_lea.vmem [#allocation7], %s486
        // Predicated region
        $region37: #{tpu_custom_call.1} parent=27 // pred_check
          %p488 = pneg %p119
        $region38: #{tpu_custom_call.1} parent=27 // pred_check_branch
          %490 = sbr.rel (%p488) target = $region40
        $region39: #{tpu_custom_call.1} parent=27 // pred_region
          %s491 = smul.u32 4, %s29
          %s492 = smul.u32 2, %s28
          %s494 = ssub.s32 8192, 8192
          %495 = vsyncadd %s484, %s494
          %s496 = smul.addr %s491, 2
          %s497 = sadd.s32 %s492, %s496
          %s498 = smul.addr %s27, 64
          %s499 = sadd.s32 %s497, %s498
          %s500 = smul.addr %s499, 128
          %s501 = scalar_lea.hbm %s2, %s500
          %s502 = sshll.u32 %s487, 4
          %s503 = int_to_ptr.vmem [resolvable:$true] %s502
          %508 = dma.vmem_to_hbm [thread:$0]  %s503, 8192, %s501, %s484, 128, 128, 8
        $region40: #{tpu_custom_call.1} parent=27 // pred_fallthru
          _
      $region28: #{tpu_custom_call.1} parent=5 // pred_fallthru
        _
      %p509 = scmp.le.s32.totalorder 2, %s17
      // Predicated region
      $region41: #{tpu_custom_call.1} parent=5 // pred_check
        %p510 = pneg %p509
      $region42: #{tpu_custom_call.1} parent=5 // pred_check_branch
        %512 = sbr.rel (%p510) target = $region44
      $region43: #{tpu_custom_call.1} parent=5 // pred_region
        %s513 = ssub.s32 %s17, 2
        // Predicated region
        $region45: #{tpu_custom_call.1} parent=43 // pred_check
          %p514 = pneg %p125
        $region46: #{tpu_custom_call.1} parent=43 // pred_check_branch
          %516 = sbr.rel (%p514) target = $region48
        $region47: #{tpu_custom_call.1} parent=43 // pred_region
          %s517 = sand.u32 %s110, 1
          %s518 = scalar_lea.sflag [#allocation4], %s517
          %s519 = sand.u32 %s110, 1
          %s520 = smul.addr %s519, 512
          %s521 = scalar_lea.vmem [#allocation7], %s520
          %522 = dma.done %s518, 8192
        $region48: #{tpu_custom_call.1} parent=43 // pred_fallthru
          _
      $region44: #{tpu_custom_call.1} parent=5 // pred_fallthru
        _
    $region6: #{tpu_custom_call.1} parent=1 // loop_footer
      %s21 = sadd.s32 1, %s17
    $region7: #{tpu_custom_call.1} parent=1 // loop_footer_branch
      %16 = sbr.rel target = $region3
    $region8: #{tpu_custom_call.1} parent=1 // loop_exit
      _
    %523 = vsyncpa [#allocation3], 1
    %s524 = scalar_lea.sflag [#allocation3], 1
    %525 = vsyncpa %s524, 1
    %526 = vsyncpa [#allocation6], 1
    %s527 = scalar_lea.sflag [#allocation6], 1
    %528 = vsyncpa %s527, 1
    %529 = vsyncpa [#allocation4], 1
    %s530 = scalar_lea.sflag [#allocation4], 1
    %531 = vsyncpa %s530, 1

</llo_original>
